<compile_context>
chip_gen: v7x
topology: tpu7x:2x2x1
jax: 0.10.0
libtpu: 0.0.40
codegen_flags: <defaults>
</compile_context>

<pallas_src>
import functools

import jax
import jax.numpy as jnp
from jax.experimental import pallas as pl
from jax.experimental.pallas import tpu as pltpu


# Finite "-inf" sentinel: exp(NEG_BIG - finite) underflows to exactly 0 in f32,
# and it never produces NaN the way a true -inf would in the online update.
NEG_BIG = -1e30


def _circle_loss_kernel(np_ref, nn_ref, sp_ref, sn_ref, out_ref,
                        mp_sc, lp_sc, mn_sc, ln_sc,
                        *, gamma, tiles_p, tiles_n):
    i = pl.program_id(0)
    last = pl.num_programs(0) - 1

    @pl.when(i == 0)
    def _init():
        mp_sc[0] = jnp.float32(NEG_BIG)
        lp_sc[0] = jnp.float32(0.0)
        mn_sc[0] = jnp.float32(NEG_BIG)
        ln_sc[0] = jnp.float32(0.0)

    def _update(x_ref, n, sign, n_tiles, m_sc, l_sc):
        tile_rows = x_ref.shape[0]
        tile_elems = tile_rows * 128

        def _logits():
            x = x_ref[...].astype(jnp.float32)          # upcast in-register
            a = jnp.maximum(sign * x + 2.0, 0.0)        # clamp_min(±x + 2, 0)
            return (sign * gamma) * (a * x)             # -ap*sp*g  /  an*sn*g

        def _accum(logit):
            # Online (streaming) logsumexp update.
            t_max = jnp.max(logit)
            m_old = m_sc[0]
            m_new = jnp.maximum(m_old, t_max)
            l_sc[0] = (l_sc[0] * jnp.exp(m_old - m_new)
                       + jnp.sum(jnp.exp(logit - m_new)))
            m_sc[0] = m_new

        in_range = i < n_tiles
        is_tail = (i + 1) * tile_elems > n   # true only for the last real tile

        @pl.when(jnp.logical_and(in_range, jnp.logical_not(is_tail)))
        def _steady():                       # hot path: no padding mask
            _accum(_logits())

        @pl.when(jnp.logical_and(in_range, is_tail))
        def _tail():                         # only the tile containing elem n-1
            logit = _logits()
            row = jax.lax.broadcasted_iota(jnp.int32, logit.shape, 0)
            col = jax.lax.broadcasted_iota(jnp.int32, logit.shape, 1)
            idx = i * tile_elems + row * 128 + col
            _accum(jnp.where(idx < n, logit, NEG_BIG))

    _update(sp_ref, np_ref[0], -1.0, tiles_p, mp_sc, lp_sc)
    _update(sn_ref, nn_ref[0], 1.0, tiles_n, mn_sc, ln_sc)

    @pl.when(i == last)
    def _finalize():
        lse_p = mp_sc[0] + jnp.log(lp_sc[0])
        lse_n = mn_sc[0] + jnp.log(ln_sc[0])
        out_ref[0] = lse_n + lse_p


def _round_up(x: int, m: int) -> int:
    return ((x + m - 1) // m) * m


def _prep(x: jax.Array, max_tile_rows: int):
    """Pad a 1-D vector (keeping its dtype) and reshape to (tiles*rows, 128)."""
    n = x.shape[0]
    rows = pl.cdiv(max(n, 1), 128)
    tile_rows = min(_round_up(rows, 16), _round_up(max_tile_rows, 16))
    n_tiles = pl.cdiv(rows, tile_rows)
    padded = n_tiles * tile_rows * 128
    x = jnp.pad(x, (0, padded - n))          # single HBM copy; padding is masked in-kernel
    return x.reshape(n_tiles * tile_rows, 128), tile_rows, n_tiles


def circle_loss(sp: jax.Array, sn: jax.Array, m: float, gamma: float,
                *, max_tile_rows: int = 4096) -> jax.Array:
    """Pallas implementation of CircleLoss(m, gamma)(sp, sn). Returns a scalar.

    Empty sp / sn (length 0) are unsupported (logsumexp over an empty dim)."""
    del m  # stored-but-unused in the PyTorch module's forward
    assert sp.ndim == 1 and sn.ndim == 1
    n_p, n_n = sp.shape[0], sn.shape[0]

    sp2, tr_p, tiles_p = _prep(sp, max_tile_rows)
    sn2, tr_n, tiles_n = _prep(sn, max_tile_rows)
    grid = max(tiles_p, tiles_n)

    kernel = functools.partial(_circle_loss_kernel, gamma=float(gamma),
                               tiles_p=tiles_p, tiles_n=tiles_n)

    bytes_in = sp2.size * sp2.dtype.itemsize + sn2.size * sn2.dtype.itemsize

    out = pl.pallas_call(
        kernel,
        out_shape=jax.ShapeDtypeStruct((1,), jnp.float32),
        grid_spec=pltpu.PrefetchScalarGridSpec(
            num_scalar_prefetch=2,           # n_p, n_n in SMEM -> no recompile per count
            grid=(grid,),
            in_specs=[
                pl.BlockSpec((tr_p, 128),
                             lambda i, n_p_ref, n_n_ref: (jnp.minimum(i, tiles_p - 1), 0)),
                pl.BlockSpec((tr_n, 128),
                             lambda i, n_p_ref, n_n_ref: (jnp.minimum(i, tiles_n - 1), 0)),
            ],
            out_specs=pl.BlockSpec(memory_space=pltpu.MemorySpace.SMEM),
            scratch_shapes=[pltpu.SMEM((1,), jnp.float32) for _ in range(4)],
        ),
        compiler_params=pltpu.CompilerParams(
            dimension_semantics=("arbitrary",),      # sequential reduction axis
            vmem_limit_bytes=32 * 1024 * 1024,       # safe on v5e/v6e/v7x
        ),
        cost_estimate=pl.CostEstimate(
            flops=10 * (n_p + n_n),
            transcendentals=n_p + n_n + 4,
            bytes_accessed=bytes_in + 8 + 4,
        ),
    )(jnp.array([n_p], jnp.int32), jnp.array([n_n], jnp.int32), sp2, sn2)
    return out[0]


def _circle_loss_ref(sp, sn, m, gamma):
    del m
    sp = sp.astype(jnp.float32)
    sn = sn.astype(jnp.float32)
    ap = jnp.maximum(-sp + 2.0, 0.0)
    an = jnp.maximum(sn + 2.0, 0.0)
    logit_p = -ap * sp * gamma
    logit_n = an * sn * gamma
    return jax.nn.logsumexp(logit_n, axis=0) + jax.nn.logsumexp(logit_p, axis=0)


if __name__ == "__main__":
    key = jax.random.PRNGKey(0)
    kp, kn, kp2, kn2 = jax.random.split(key, 4)
    m, gamma = 0.25, 64.0

    # Case 1: tiny, module-consistent shapes (sp = positive-pair sims, sn = negative-pair sims).
    sp = jnp.tanh(jax.random.normal(kp, (8,), dtype=jnp.float32))
    sn = jnp.tanh(jax.random.normal(kn, (12,), dtype=jnp.float32))
    out = jax.block_until_ready(circle_loss(sp, sn, m, gamma))
    ref = _circle_loss_ref(sp, sn, m, gamma)
    assert jnp.allclose(out, ref, rtol=1e-5, atol=1e-4), (out, ref)

    # Case 2: exercise the multi-tile online-logsumexp path (grid > 1, mismatched
    # tile counts between sp and sn, tail-tile masking) with small tiles.
    sp_big = jnp.tanh(jax.random.normal(kp2, (4133,), dtype=jnp.float32))
    sn_big = jnp.tanh(jax.random.normal(kn2, (777,), dtype=jnp.float32))
    out2 = jax.block_until_ready(circle_loss(sp_big, sn_big, m, gamma, max_tile_rows=16))
    ref2 = _circle_loss_ref(sp_big, sn_big, m, gamma)
    assert jnp.allclose(out2, ref2, rtol=1e-5, atol=1e-4), (out2, ref2)

    print("KERNEL_OK")
</pallas_src>

<mosaic_0001>
module attributes {stable_mosaic.version = 11 : i64} {
  func.func @_circle_loss_kernel(%arg0: i32, %arg1: memref<1xi32, #tpu.memory_space<smem>>, %arg2: memref<1xi32, #tpu.memory_space<smem>>, %arg3: memref<16x128xf32, #tpu.memory_space<vmem>>, %arg4: memref<16x128xf32, #tpu.memory_space<vmem>>, %arg5: memref<1xf32, #tpu.memory_space<smem>>, %arg6: memref<1xf32, #tpu.memory_space<smem>>, %arg7: memref<1xf32, #tpu.memory_space<smem>>, %arg8: memref<1xf32, #tpu.memory_space<smem>>, %arg9: memref<1xf32, #tpu.memory_space<smem>>) attributes {dimension_semantics = [#tpu.dimension_semantics<arbitrary>], iteration_bounds = array<i64: 1>, scalar_prefetch = 2 : i64, scratch_operands = 4 : i64, tpu.core_type = #tpu.core_type<tc>, window_params = [{transform_indices = @transform_0, window_bounds = array<i64: 16, 128>}, {transform_indices = @transform_1, window_bounds = array<i64: 16, 128>}, {transform_indices = @transform_2, window_bounds = array<i64: 1>}]} {
    %c0_i32 = arith.constant 0 : i32
    %0 = arith.cmpi eq, %arg0, %c0_i32 : i32
    %1 = arith.extui %0 : i1 to i32
    %c0_i32_0 = arith.constant 0 : i32
    %2 = arith.cmpi ne, %1, %c0_i32_0 : i32
    scf.if %2 {
      %cst = arith.constant -1.000000e+30 : f32
      %c0_13 = arith.constant 0 : index
      %30 = memref.load %arg6[%c0_13] : memref<1xf32, #tpu.memory_space<smem>>
      memref.store %cst, %arg6[%c0_13] : memref<1xf32, #tpu.memory_space<smem>>
      %cst_14 = arith.constant 0.000000e+00 : f32
      %c0_15 = arith.constant 0 : index
      %31 = memref.load %arg7[%c0_15] : memref<1xf32, #tpu.memory_space<smem>>
      memref.store %cst_14, %arg7[%c0_15] : memref<1xf32, #tpu.memory_space<smem>>
      %cst_16 = arith.constant -1.000000e+30 : f32
      %c0_17 = arith.constant 0 : index
      %32 = memref.load %arg8[%c0_17] : memref<1xf32, #tpu.memory_space<smem>>
      memref.store %cst_16, %arg8[%c0_17] : memref<1xf32, #tpu.memory_space<smem>>
      %cst_18 = arith.constant 0.000000e+00 : f32
      %c0_19 = arith.constant 0 : index
      %33 = memref.load %arg9[%c0_19] : memref<1xf32, #tpu.memory_space<smem>>
      memref.store %cst_18, %arg9[%c0_19] : memref<1xf32, #tpu.memory_space<smem>>
    } else {
    }
    %c0 = arith.constant 0 : index
    %3 = memref.load %arg1[%c0] : memref<1xi32, #tpu.memory_space<smem>>
    %c1_i32 = arith.constant 1 : i32
    %4 = arith.cmpi slt, %arg0, %c1_i32 : i32
    %c1_i32_1 = arith.constant 1 : i32
    %5 = arith.addi %arg0, %c1_i32_1 : i32
    %c2048_i32 = arith.constant 2048 : i32
    %6 = arith.muli %5, %c2048_i32 : i32
    %7 = arith.cmpi sgt, %6, %3 : i32
    %true = arith.constant true
    %8 = arith.xori %7, %true : i1
    %9 = arith.andi %4, %8 : i1
    %10 = arith.extui %9 : i1 to i32
    %c0_i32_2 = arith.constant 0 : i32
    %11 = arith.cmpi ne, %10, %c0_i32_2 : i32
    scf.if %11 {
      %c0_13 = arith.constant 0 : index
      %c0_14 = arith.constant 0 : index
      %30 = vector.load %arg3[%c0_13, %c0_14] : memref<16x128xf32, #tpu.memory_space<vmem>>, vector<16x128xf32>
      %cst = arith.constant -1.000000e+00 : f32
      %31 = vector.broadcast %cst : f32 to vector<16x128xf32>
      %32 = arith.mulf %31, %30 : vector<16x128xf32>
      %cst_15 = arith.constant 2.000000e+00 : f32
      %33 = vector.broadcast %cst_15 : f32 to vector<16x128xf32>
      %34 = arith.addf %32, %33 : vector<16x128xf32>
      %cst_16 = arith.constant 0.000000e+00 : f32
      %35 = vector.broadcast %cst_16 : f32 to vector<16x128xf32>
      %36 = arith.maximumf %34, %35 : vector<16x128xf32>
      %37 = arith.mulf %36, %30 : vector<16x128xf32>
      %cst_17 = arith.constant -6.400000e+01 : f32
      %38 = vector.broadcast %cst_17 : f32 to vector<16x128xf32>
      %39 = arith.mulf %38, %37 : vector<16x128xf32>
      %40 = vector.shape_cast %39 : vector<16x128xf32> to vector<1x16x128xf32>
      %cst_18 = arith.constant dense<0xFF800000> : vector<1xf32>
      %41 = vector.multi_reduction <maximumf>, %40, %cst_18 [1, 2] : vector<1x16x128xf32> to vector<1xf32>
      %42 = vector.shape_cast %41 : vector<1xf32> to vector<1x1x1xf32>
      %43 = vector.extract %42[0, 0, 0] : f32 from vector<1x1x1xf32>
      %c0_19 = arith.constant 0 : index
      %44 = memref.load %arg6[%c0_19] : memref<1xf32, #tpu.memory_space<smem>>
      %45 = arith.maximumf %44, %43 : f32
      %c0_20 = arith.constant 0 : index
      %46 = memref.load %arg7[%c0_20] : memref<1xf32, #tpu.memory_space<smem>>
      %47 = arith.subf %44, %45 : f32
      %48 = math.exp %47 : f32
      %49 = arith.mulf %46, %48 : f32
      %50 = vector.broadcast %45 : f32 to vector<16x128xf32>
      %51 = arith.subf %39, %50 : vector<16x128xf32>
      %52 = math.exp %51 : vector<16x128xf32>
      %53 = vector.shape_cast %52 : vector<16x128xf32> to vector<1x16x128xf32>
      %cst_21 = arith.constant dense<0.000000e+00> : vector<1xf32>
      %54 = vector.multi_reduction <add>, %53, %cst_21 [1, 2] : vector<1x16x128xf32> to vector<1xf32>
      %55 = vector.shape_cast %54 : vector<1xf32> to vector<1x1x1xf32>
      %56 = vector.extract %55[0, 0, 0] : f32 from vector<1x1x1xf32>
      %57 = arith.addf %49, %56 : f32
      %c0_22 = arith.constant 0 : index
      %58 = memref.load %arg7[%c0_22] : memref<1xf32, #tpu.memory_space<smem>>
      memref.store %57, %arg7[%c0_22] : memref<1xf32, #tpu.memory_space<smem>>
      %c0_23 = arith.constant 0 : index
      %59 = memref.load %arg6[%c0_23] : memref<1xf32, #tpu.memory_space<smem>>
      memref.store %45, %arg6[%c0_23] : memref<1xf32, #tpu.memory_space<smem>>
    } else {
    }
    %12 = arith.andi %4, %7 : i1
    %13 = arith.extui %12 : i1 to i32
    %c0_i32_3 = arith.constant 0 : i32
    %14 = arith.cmpi ne, %13, %c0_i32_3 : i32
    scf.if %14 {
      %c0_13 = arith.constant 0 : index
      %c0_14 = arith.constant 0 : index
      %30 = vector.load %arg3[%c0_13, %c0_14] : memref<16x128xf32, #tpu.memory_space<vmem>>, vector<16x128xf32>
      %cst = arith.constant -1.000000e+00 : f32
      %31 = vector.broadcast %cst : f32 to vector<16x128xf32>
      %32 = arith.mulf %31, %30 : vector<16x128xf32>
      %cst_15 = arith.constant 2.000000e+00 : f32
      %33 = vector.broadcast %cst_15 : f32 to vector<16x128xf32>
      %34 = arith.addf %32, %33 : vector<16x128xf32>
      %cst_16 = arith.constant 0.000000e+00 : f32
      %35 = vector.broadcast %cst_16 : f32 to vector<16x128xf32>
      %36 = arith.maximumf %34, %35 : vector<16x128xf32>
      %37 = arith.mulf %36, %30 : vector<16x128xf32>
      %cst_17 = arith.constant -6.400000e+01 : f32
      %38 = vector.broadcast %cst_17 : f32 to vector<16x128xf32>
      %39 = arith.mulf %38, %37 : vector<16x128xf32>
      %40 = tpu.iota {dimensions = array<i32: 0>} : vector<16x128xi32>
      %41 = tpu.iota {dimensions = array<i32: 1>} : vector<16x128xi32>
      %c2048_i32_18 = arith.constant 2048 : i32
      %42 = arith.muli %arg0, %c2048_i32_18 : i32
      %c128_i32 = arith.constant 128 : i32
      %43 = vector.broadcast %c128_i32 : i32 to vector<16x128xi32>
      %44 = arith.muli %40, %43 : vector<16x128xi32>
      %45 = vector.broadcast %42 : i32 to vector<16x128xi32>
      %46 = arith.addi %45, %44 : vector<16x128xi32>
      %47 = arith.addi %46, %41 : vector<16x128xi32>
      %48 = vector.broadcast %3 : i32 to vector<16x128xi32>
      %49 = arith.cmpi slt, %47, %48 : vector<16x128xi32>
      %cst_19 = arith.constant -1.000000e+30 : f32
      %50 = vector.broadcast %cst_19 : f32 to vector<16x128xf32>
      %51 = arith.select %49, %39, %50 : vector<16x128xi1>, vector<16x128xf32>
      %52 = vector.shape_cast %51 : vector<16x128xf32> to vector<1x16x128xf32>
      %cst_20 = arith.constant dense<0xFF800000> : vector<1xf32>
      %53 = vector.multi_reduction <maximumf>, %52, %cst_20 [1, 2] : vector<1x16x128xf32> to vector<1xf32>
      %54 = vector.shape_cast %53 : vector<1xf32> to vector<1x1x1xf32>
      %55 = vector.extract %54[0, 0, 0] : f32 from vector<1x1x1xf32>
      %c0_21 = arith.constant 0 : index
      %56 = memref.load %arg6[%c0_21] : memref<1xf32, #tpu.memory_space<smem>>
      %57 = arith.maximumf %56, %55 : f32
      %c0_22 = arith.constant 0 : index
      %58 = memref.load %arg7[%c0_22] : memref<1xf32, #tpu.memory_space<smem>>
      %59 = arith.subf %56, %57 : f32
      %60 = math.exp %59 : f32
      %61 = arith.mulf %58, %60 : f32
      %62 = vector.broadcast %57 : f32 to vector<16x128xf32>
      %63 = arith.subf %51, %62 : vector<16x128xf32>
      %64 = math.exp %63 : vector<16x128xf32>
      %65 = vector.shape_cast %64 : vector<16x128xf32> to vector<1x16x128xf32>
      %cst_23 = arith.constant dense<0.000000e+00> : vector<1xf32>
      %66 = vector.multi_reduction <add>, %65, %cst_23 [1, 2] : vector<1x16x128xf32> to vector<1xf32>
      %67 = vector.shape_cast %66 : vector<1xf32> to vector<1x1x1xf32>
      %68 = vector.extract %67[0, 0, 0] : f32 from vector<1x1x1xf32>
      %69 = arith.addf %61, %68 : f32
      %c0_24 = arith.constant 0 : index
      %70 = memref.load %arg7[%c0_24] : memref<1xf32, #tpu.memory_space<smem>>
      memref.store %69, %arg7[%c0_24] : memref<1xf32, #tpu.memory_space<smem>>
      %c0_25 = arith.constant 0 : index
      %71 = memref.load %arg6[%c0_25] : memref<1xf32, #tpu.memory_space<smem>>
      memref.store %57, %arg6[%c0_25] : memref<1xf32, #tpu.memory_space<smem>>
    } else {
    }
    %c0_4 = arith.constant 0 : index
    %15 = memref.load %arg2[%c0_4] : memref<1xi32, #tpu.memory_space<smem>>
    %c1_i32_5 = arith.constant 1 : i32
    %16 = arith.cmpi slt, %arg0, %c1_i32_5 : i32
    %c1_i32_6 = arith.constant 1 : i32
    %17 = arith.addi %arg0, %c1_i32_6 : i32
    %c2048_i32_7 = arith.constant 2048 : i32
    %18 = arith.muli %17, %c2048_i32_7 : i32
    %19 = arith.cmpi sgt, %18, %15 : i32
    %true_8 = arith.constant true
    %20 = arith.xori %19, %true_8 : i1
    %21 = arith.andi %16, %20 : i1
    %22 = arith.extui %21 : i1 to i32
    %c0_i32_9 = arith.constant 0 : i32
    %23 = arith.cmpi ne, %22, %c0_i32_9 : i32
    scf.if %23 {
      %c0_13 = arith.constant 0 : index
      %c0_14 = arith.constant 0 : index
      %30 = vector.load %arg4[%c0_13, %c0_14] : memref<16x128xf32, #tpu.memory_space<vmem>>, vector<16x128xf32>
      %cst = arith.constant 1.000000e+00 : f32
      %31 = vector.broadcast %cst : f32 to vector<16x128xf32>
      %32 = arith.mulf %31, %30 : vector<16x128xf32>
      %cst_15 = arith.constant 2.000000e+00 : f32
      %33 = vector.broadcast %cst_15 : f32 to vector<16x128xf32>
      %34 = arith.addf %32, %33 : vector<16x128xf32>
      %cst_16 = arith.constant 0.000000e+00 : f32
      %35 = vector.broadcast %cst_16 : f32 to vector<16x128xf32>
      %36 = arith.maximumf %34, %35 : vector<16x128xf32>
      %37 = arith.mulf %36, %30 : vector<16x128xf32>
      %cst_17 = arith.constant 6.400000e+01 : f32
      %38 = vector.broadcast %cst_17 : f32 to vector<16x128xf32>
      %39 = arith.mulf %38, %37 : vector<16x128xf32>
      %40 = vector.shape_cast %39 : vector<16x128xf32> to vector<1x16x128xf32>
      %cst_18 = arith.constant dense<0xFF800000> : vector<1xf32>
      %41 = vector.multi_reduction <maximumf>, %40, %cst_18 [1, 2] : vector<1x16x128xf32> to vector<1xf32>
      %42 = vector.shape_cast %41 : vector<1xf32> to vector<1x1x1xf32>
      %43 = vector.extract %42[0, 0, 0] : f32 from vector<1x1x1xf32>
      %c0_19 = arith.constant 0 : index
      %44 = memref.load %arg8[%c0_19] : memref<1xf32, #tpu.memory_space<smem>>
      %45 = arith.maximumf %44, %43 : f32
      %c0_20 = arith.constant 0 : index
      %46 = memref.load %arg9[%c0_20] : memref<1xf32, #tpu.memory_space<smem>>
      %47 = arith.subf %44, %45 : f32
      %48 = math.exp %47 : f32
      %49 = arith.mulf %46, %48 : f32
      %50 = vector.broadcast %45 : f32 to vector<16x128xf32>
      %51 = arith.subf %39, %50 : vector<16x128xf32>
      %52 = math.exp %51 : vector<16x128xf32>
      %53 = vector.shape_cast %52 : vector<16x128xf32> to vector<1x16x128xf32>
      %cst_21 = arith.constant dense<0.000000e+00> : vector<1xf32>
      %54 = vector.multi_reduction <add>, %53, %cst_21 [1, 2] : vector<1x16x128xf32> to vector<1xf32>
      %55 = vector.shape_cast %54 : vector<1xf32> to vector<1x1x1xf32>
      %56 = vector.extract %55[0, 0, 0] : f32 from vector<1x1x1xf32>
      %57 = arith.addf %49, %56 : f32
      %c0_22 = arith.constant 0 : index
      %58 = memref.load %arg9[%c0_22] : memref<1xf32, #tpu.memory_space<smem>>
      memref.store %57, %arg9[%c0_22] : memref<1xf32, #tpu.memory_space<smem>>
      %c0_23 = arith.constant 0 : index
      %59 = memref.load %arg8[%c0_23] : memref<1xf32, #tpu.memory_space<smem>>
      memref.store %45, %arg8[%c0_23] : memref<1xf32, #tpu.memory_space<smem>>
    } else {
    }
    %24 = arith.andi %16, %19 : i1
    %25 = arith.extui %24 : i1 to i32
    %c0_i32_10 = arith.constant 0 : i32
    %26 = arith.cmpi ne, %25, %c0_i32_10 : i32
    scf.if %26 {
      %c0_13 = arith.constant 0 : index
      %c0_14 = arith.constant 0 : index
      %30 = vector.load %arg4[%c0_13, %c0_14] : memref<16x128xf32, #tpu.memory_space<vmem>>, vector<16x128xf32>
      %cst = arith.constant 1.000000e+00 : f32
      %31 = vector.broadcast %cst : f32 to vector<16x128xf32>
      %32 = arith.mulf %31, %30 : vector<16x128xf32>
      %cst_15 = arith.constant 2.000000e+00 : f32
      %33 = vector.broadcast %cst_15 : f32 to vector<16x128xf32>
      %34 = arith.addf %32, %33 : vector<16x128xf32>
      %cst_16 = arith.constant 0.000000e+00 : f32
      %35 = vector.broadcast %cst_16 : f32 to vector<16x128xf32>
      %36 = arith.maximumf %34, %35 : vector<16x128xf32>
      %37 = arith.mulf %36, %30 : vector<16x128xf32>
      %cst_17 = arith.constant 6.400000e+01 : f32
      %38 = vector.broadcast %cst_17 : f32 to vector<16x128xf32>
      %39 = arith.mulf %38, %37 : vector<16x128xf32>
      %40 = tpu.iota {dimensions = array<i32: 0>} : vector<16x128xi32>
      %41 = tpu.iota {dimensions = array<i32: 1>} : vector<16x128xi32>
      %c2048_i32_18 = arith.constant 2048 : i32
      %42 = arith.muli %arg0, %c2048_i32_18 : i32
      %c128_i32 = arith.constant 128 : i32
      %43 = vector.broadcast %c128_i32 : i32 to vector<16x128xi32>
      %44 = arith.muli %40, %43 : vector<16x128xi32>
      %45 = vector.broadcast %42 : i32 to vector<16x128xi32>
      %46 = arith.addi %45, %44 : vector<16x128xi32>
      %47 = arith.addi %46, %41 : vector<16x128xi32>
      %48 = vector.broadcast %15 : i32 to vector<16x128xi32>
      %49 = arith.cmpi slt, %47, %48 : vector<16x128xi32>
      %cst_19 = arith.constant -1.000000e+30 : f32
      %50 = vector.broadcast %cst_19 : f32 to vector<16x128xf32>
      %51 = arith.select %49, %39, %50 : vector<16x128xi1>, vector<16x128xf32>
      %52 = vector.shape_cast %51 : vector<16x128xf32> to vector<1x16x128xf32>
      %cst_20 = arith.constant dense<0xFF800000> : vector<1xf32>
      %53 = vector.multi_reduction <maximumf>, %52, %cst_20 [1, 2] : vector<1x16x128xf32> to vector<1xf32>
      %54 = vector.shape_cast %53 : vector<1xf32> to vector<1x1x1xf32>
      %55 = vector.extract %54[0, 0, 0] : f32 from vector<1x1x1xf32>
      %c0_21 = arith.constant 0 : index
      %56 = memref.load %arg8[%c0_21] : memref<1xf32, #tpu.memory_space<smem>>
      %57 = arith.maximumf %56, %55 : f32
      %c0_22 = arith.constant 0 : index
      %58 = memref.load %arg9[%c0_22] : memref<1xf32, #tpu.memory_space<smem>>
      %59 = arith.subf %56, %57 : f32
      %60 = math.exp %59 : f32
      %61 = arith.mulf %58, %60 : f32
      %62 = vector.broadcast %57 : f32 to vector<16x128xf32>
      %63 = arith.subf %51, %62 : vector<16x128xf32>
      %64 = math.exp %63 : vector<16x128xf32>
      %65 = vector.shape_cast %64 : vector<16x128xf32> to vector<1x16x128xf32>
      %cst_23 = arith.constant dense<0.000000e+00> : vector<1xf32>
      %66 = vector.multi_reduction <add>, %65, %cst_23 [1, 2] : vector<1x16x128xf32> to vector<1xf32>
      %67 = vector.shape_cast %66 : vector<1xf32> to vector<1x1x1xf32>
      %68 = vector.extract %67[0, 0, 0] : f32 from vector<1x1x1xf32>
      %69 = arith.addf %61, %68 : f32
      %c0_24 = arith.constant 0 : index
      %70 = memref.load %arg9[%c0_24] : memref<1xf32, #tpu.memory_space<smem>>
      memref.store %69, %arg9[%c0_24] : memref<1xf32, #tpu.memory_space<smem>>
      %c0_25 = arith.constant 0 : index
      %71 = memref.load %arg8[%c0_25] : memref<1xf32, #tpu.memory_space<smem>>
      memref.store %57, %arg8[%c0_25] : memref<1xf32, #tpu.memory_space<smem>>
    } else {
    }
    %c0_i32_11 = arith.constant 0 : i32
    %27 = arith.cmpi eq, %arg0, %c0_i32_11 : i32
    %28 = arith.extui %27 : i1 to i32
    %c0_i32_12 = arith.constant 0 : i32
    %29 = arith.cmpi ne, %28, %c0_i32_12 : i32
    scf.if %29 {
      %c0_13 = arith.constant 0 : index
      %30 = memref.load %arg6[%c0_13] : memref<1xf32, #tpu.memory_space<smem>>
      %c0_14 = arith.constant 0 : index
      %31 = memref.load %arg7[%c0_14] : memref<1xf32, #tpu.memory_space<smem>>
      %32 = math.log %31 : f32
      %33 = arith.addf %30, %32 : f32
      %c0_15 = arith.constant 0 : index
      %34 = memref.load %arg8[%c0_15] : memref<1xf32, #tpu.memory_space<smem>>
      %c0_16 = arith.constant 0 : index
      %35 = memref.load %arg9[%c0_16] : memref<1xf32, #tpu.memory_space<smem>>
      %36 = math.log %35 : f32
      %37 = arith.addf %34, %36 : f32
      %38 = arith.addf %37, %33 : f32
      %c0_17 = arith.constant 0 : index
      %39 = memref.load %arg5[%c0_17] : memref<1xf32, #tpu.memory_space<smem>>
      memref.store %38, %arg5[%c0_17] : memref<1xf32, #tpu.memory_space<smem>>
    } else {
    }
    return
  }
  func.func @transform_0(%arg0: i32, %arg1: memref<1xi32, #tpu.memory_space<smem>>, %arg2: memref<1xi32, #tpu.memory_space<smem>>) -> (i32, i32) {
    %c0_i32 = arith.constant 0 : i32
    %0 = arith.minsi %arg0, %c0_i32 : i32
    %c0_i32_0 = arith.constant 0 : i32
    %c0_i32_1 = arith.constant 0 : i32
    return %0, %c0_i32_0 : i32, i32
  }
  func.func @transform_1(%arg0: i32, %arg1: memref<1xi32, #tpu.memory_space<smem>>, %arg2: memref<1xi32, #tpu.memory_space<smem>>) -> (i32, i32) {
    %c0_i32 = arith.constant 0 : i32
    %0 = arith.minsi %arg0, %c0_i32 : i32
    %c0_i32_0 = arith.constant 0 : i32
    %c0_i32_1 = arith.constant 0 : i32
    return %0, %c0_i32_0 : i32, i32
  }
  func.func @transform_2(%arg0: i32, %arg1: memref<1xi32, #tpu.memory_space<smem>>, %arg2: memref<1xi32, #tpu.memory_space<smem>>) -> i32 {
    %c0_i32 = arith.constant 0 : i32
    %c0_i32_0 = arith.constant 0 : i32
    return %c0_i32 : i32
  }
}

</mosaic_0001>

<llo_original>
// kernel: tpu_custom_call.1
$region0: #{tpu_custom_call.1}
  #allocation0 [shape = 'u32[]', space=smem, size = 0x4, offset = 0x4, fixed_abs, tag = 'smem constant byte address 0x4 - core index']
  #allocation1 [shape = 'u32[144,128]{1,0:T(1,128)}', space=vmem, size = 0x12000, scoped, tag = 'internal scratch']
  #allocation2 [shape = 'f32[1]{0:T(128)}', space=smem, size = 0x200, scoped, tag = 'scratch operand']
  #allocation3 [shape = 'f32[1]{0:T(128)}', space=smem, size = 0x200, scoped, tag = 'scratch operand']
  #allocation4 [shape = 'f32[1]{0:T(128)}', space=smem, size = 0x200, scoped, tag = 'scratch operand']
  #allocation5 [shape = 'f32[1]{0:T(128)}', space=smem, size = 0x200, scoped, tag = 'scratch operand']
  #allocation6 [shape = 's32[1]{0}', space=sflag, size = 0x4, scoped, tag = 'scoped memory for tpu_custom_call.1']
  #allocation7 [shape = 's32[1]{0:T(128)S(6)}', space=smem, size = 0x200, scoped, tag = 'prefetched SMEM operand 0']
  #allocation8 [shape = 's32[1]{0:T(128)S(6)}', space=smem, size = 0x200, scoped, tag = 'prefetched SMEM operand 1']
  %s0 = inlined_call_operand.<no memory space> [shape: s32[1], index: 0, kind: input, shape index: {}]
  %s1 = inlined_call_operand.<no memory space> [shape: s32[1], index: 1, kind: input, shape index: {}]
  %s2 = inlined_call_operand.hbm [shape: f32[16,128], index: 2, kind: input, shape index: {}]
  %s3 = inlined_call_operand.hbm [shape: f32[16,128], index: 3, kind: input, shape index: {}]
  %s4 = inlined_call_operand.hbm [shape: f32[1], index: 4, kind: output, shape index: {}]
  %s5 = sld [smem:[#allocation0]]
  $region50: #{tpu_custom_call.1} parent=0
    _
  %s7 = ssub.s32 1, %s5
  %s8 = scalar_select 0, %s7, %s5
  %9 = sst [smem:[#allocation7]] %s0
  %10 = sst [smem:[#allocation8]] %s1
  $region1: #{tpu_custom_call.1} parent=0
    #allocation9 [shape = 'u8[8192]{0}', space=vmem, size = 0x2000, scoped, tag = 'input window, operand 2, single buffered']
    #allocation10 [shape = 's32[1]{0}', space=sflag, size = 0x4, scoped, tag = 'scoped memory for tpu_custom_call.1']
    #allocation11 [shape = 's32[1]{0}', space=sflag, size = 0x4, scoped, tag = 'scoped memory for tpu_custom_call.1']
    #allocation12 [shape = 'u8[8192]{0}', space=vmem, size = 0x2000, scoped, tag = 'input window, operand 3, single buffered']
    #allocation13 [shape = 's32[1]{0}', space=sflag, size = 0x4, scoped, tag = 'scoped memory for tpu_custom_call.1']
    #allocation14 [shape = 'u8[512]{0}', space=smem, size = 0x200, scoped, tag = 'output window, operand 0, single buffered']
    %11 = vsyncpa [#allocation10], 0
    %12 = vsyncpa [#allocation13], 0
    %13 = vsyncpa [#allocation11], 0
    // Predicated region
    $region2: #{tpu_custom_call.1} parent=1 // pred_check
      _
    $region3: #{tpu_custom_call.1} parent=1 // pred_check_branch
      %15 = sbr.rel (0) target = $region5
    $region4: #{tpu_custom_call.1} parent=1 // pred_region
      %s17 = ssub.s32 256, 256
      %18 = vsyncadd [#allocation10], %s17
      %s19 = sshll.u32 [#allocation9], 4
      %s20 = int_to_ptr.vmem [resolvable:$true] %s19
      %25 = dma.hbm_to_vmem [thread:$0]  %s2, 256, %s20, [#allocation10], 128, 128, 8
    $region5: #{tpu_custom_call.1} parent=1 // pred_fallthru
      _
    // Predicated region
    $region6: #{tpu_custom_call.1} parent=1 // pred_check
      _
    $region7: #{tpu_custom_call.1} parent=1 // pred_check_branch
      %27 = sbr.rel (0) target = $region9
    $region8: #{tpu_custom_call.1} parent=1 // pred_region
      %s29 = ssub.s32 256, 256
      %30 = vsyncadd [#allocation13], %s29
      %s31 = sshll.u32 [#allocation12], 4
      %s32 = int_to_ptr.vmem [resolvable:$true] %s31
      %37 = dma.hbm_to_vmem [thread:$0]  %s3, 256, %s32, [#allocation13], 128, 128, 8
    $region9: #{tpu_custom_call.1} parent=1 // pred_fallthru
      _
    // Predicated region
    $region10: #{tpu_custom_call.1} parent=1 // pred_check
      _
    $region11: #{tpu_custom_call.1} parent=1 // pred_check_branch
      %39 = sbr.rel (0) target = $region13
    $region12: #{tpu_custom_call.1} parent=1 // pred_region
      %40 = dma.done [#allocation10], 256
    $region13: #{tpu_custom_call.1} parent=1 // pred_fallthru
      _
    // Predicated region
    $region14: #{tpu_custom_call.1} parent=1 // pred_check
      _
    $region15: #{tpu_custom_call.1} parent=1 // pred_check_branch
      %42 = sbr.rel (0) target = $region17
    $region16: #{tpu_custom_call.1} parent=1 // pred_region
      %43 = dma.done [#allocation13], 256
    $region17: #{tpu_custom_call.1} parent=1 // pred_fallthru
      _
    %p44 = scmp.eq.s32.totalorder 0, 0
    // Predicated region
    $region18: #{tpu_custom_call.1} parent=1 // pred_check
      %p45 = pneg %p44
    $region19: #{tpu_custom_call.1} parent=1 // pred_check_branch
      %47 = sbr.rel (%p45) target = $region21
    $region20: #{tpu_custom_call.1} parent=1 // pred_region
      %s48 = scalar_lea.smem [#allocation2], 0
      %49 = sst [smem:[%s48]] -1e+30
      %s50 = scalar_lea.smem [#allocation3], 0
      %51 = sst [smem:[%s50]] 0.0
      %s52 = scalar_lea.smem [#allocation4], 0
      %53 = sst [smem:[%s52]] -1e+30
      %s54 = scalar_lea.smem [#allocation5], 0
      %55 = sst [smem:[%s54]] 0.0
    $region21: #{tpu_custom_call.1} parent=1 // pred_fallthru
      _
    %s56 = sld [smem:[#allocation7]]
    %p57 = scmp.lt.s32.totalorder 0, 1
    %s58 = sadd.s32 0, 1
    %s59 = smul.u32 %s58, 2048
    %p60 = scmp.gt.s32.totalorder %s59, %s56
    %p61 = scmp.le.s32.totalorder %s59, %s56
    %p62 = pnand %p57, %p61
    %p63 = pneg %p62
    // Predicated region
    $region22: #{tpu_custom_call.1} parent=1 // pred_check
      _
    $region23: #{tpu_custom_call.1} parent=1 // pred_check_branch
      %65 = sbr.rel (%p62) target = $region25
    $region24: #{tpu_custom_call.1} parent=1 // pred_region
      %v66 = vld [vmem:[#allocation9] sm:$0xff]
      %v67 = vld [vmem:[#allocation9 + $0x8] sm:$0xff]
      %v68 = vmul.f32 %v66, -1.0
      %v69 = vmul.f32 %v67, -1.0
      %v70 = vadd.f32 %v68, 2.0
      %v71 = vadd.f32 %v69, 2.0
      %v72 = vmax.f32 %v70, 0.0
      %v73 = vmax.f32 %v71, 0.0
      %v74 = vmul.f32 %v72, %v66
      %v75 = vmul.f32 %v73, %v67
      %v76 = vmul.f32 %v74, -64.0
      %v77 = vmul.f32 %v75, -64.0
      %v78 = vmax.f32 %v76, %v77
      %79 = vmax.xlane.f32.xlu0 %v78
      %v80 = vpop.xlane.xlu0 %79
      %v81 = vrot.slane %v80, 4
      %v82 = vmax.f32 %v80, %v81
      %v83 = vrot.slane %v82, 2
      %v84 = vmax.f32 %v82, %v83
      %v85 = vrot.slane %v84, 1
      %v86 = vmax.f32 %v84, %v85
      %s87 = vtos %v86
      %s88 = sld [smem:[#allocation2]]
      %s89 = smax.f32 %s88, %s87
      %s90 = sld [smem:[#allocation3]]
      %s91 = ssub.f32 %s88, %s89
      %v92 = vstv %s91
      %v93 = vmul.f32 %v92, 1.442695
      %v94 = vpow.pop %v93
      %s95 = vtos %v94
      %s96 = smul.f32 %s90, %s95
      %v97 = vstv %s89
      %v98 = vsub.f32 %v76, %v97
      %v99 = vsub.f32 %v77, %v97
      %v100 = vmul.f32 %v98, 1.442695
      %v101 = vpow.pop %v100
      %v102 = vmul.f32 %v99, 1.442695
      %v103 = vpow.pop %v102
      %v104 = vadd.f32 %v101, %v103
      %105 = vadd.xlane.f32.xlu0 %v104
      %v106 = vpop.xlane.xlu0 %105
      %v107 = vrot.slane %v106, 4
      %v108 = vadd.f32 %v106, %v107
      %v109 = vrot.slane %v108, 2
      %v110 = vadd.f32 %v108, %v109
      %v111 = vrot.slane %v110, 1
      %v112 = vadd.f32 %v110, %v111
      %s113 = vtos %v112
      %s114 = sadd.f32 %s96, %s113
      %s115 = scalar_lea.smem [#allocation3], 0
      %116 = sst [smem:[%s115]] %s114
      %s117 = scalar_lea.smem [#allocation2], 0
      %118 = sst [smem:[%s117]] %s89
    $region25: #{tpu_custom_call.1} parent=1 // pred_fallthru
      _
    %p119 = pnand %p57, %p60
    %p120 = pneg %p119
    // Predicated region
    $region26: #{tpu_custom_call.1} parent=1 // pred_check
      _
    $region27: #{tpu_custom_call.1} parent=1 // pred_check_branch
      %122 = sbr.rel (%p119) target = $region29
    $region28: #{tpu_custom_call.1} parent=1 // pred_region
      %v123 = vld [vmem:[#allocation9] sm:$0xff]
      %v124 = vld [vmem:[#allocation9 + $0x8] sm:$0xff]
      %v125 = vmul.f32 %v123, -1.0
      %v126 = vmul.f32 %v124, -1.0
      %v127 = vadd.f32 %v125, 2.0
      %v128 = vadd.f32 %v126, 2.0
      %v129 = vmax.f32 %v127, 0.0
      %v130 = vmax.f32 %v128, 0.0
      %v131 = vmul.f32 %v129, %v123
      %v132 = vmul.f32 %v130, %v124
      %v133 = vmul.f32 %v131, -64.0
      %v134 = vmul.f32 %v132, -64.0
      %v135 = vlaneseq
      %v136 = vshrl.u32 %v135, 7
      %v137 = vadd.s32 %v136, 8
      %v138 = vlaneseq
      %v139 = vand.u32 %v138, 127
      %s140 = smul.u32 0, 2048
      %v141 = vmul.u32 %v136, 128
      %v142 = vmul.u32 %v137, 128
      %v143 = vstv %s140
      %v144 = vadd.s32 %v143, %v141
      %v145 = vadd.s32 %v143, %v142
      %v146 = vadd.s32 %v144, %v139
      %v147 = vadd.s32 %v145, %v139
      %v148 = vstv %s56
      %vm149 = vcmp.lt.s32.totalorder %v146, %v148
      %vm150 = vcmp.lt.s32.totalorder %v147, %v148
      %v151 = vsel %vm149, %v133, -1e+30
      %v152 = vsel %vm150, %v134, -1e+30
      %v153 = vmax.f32 %v151, %v152
      %154 = vmax.xlane.f32.xlu0 %v153
      %v155 = vpop.xlane.xlu0 %154
      %v156 = vrot.slane %v155, 4
      %v157 = vmax.f32 %v155, %v156
      %v158 = vrot.slane %v157, 2
      %v159 = vmax.f32 %v157, %v158
      %v160 = vrot.slane %v159, 1
      %v161 = vmax.f32 %v159, %v160
      %s162 = vtos %v161
      %s163 = sld [smem:[#allocation2]]
      %s164 = smax.f32 %s163, %s162
      %s165 = sld [smem:[#allocation3]]
      %s166 = ssub.f32 %s163, %s164
      %v167 = vstv %s166
      %v168 = vmul.f32 %v167, 1.442695
      %v169 = vpow.pop %v168
      %s170 = vtos %v169
      %s171 = smul.f32 %s165, %s170
      %v172 = vstv %s164
      %v173 = vsub.f32 %v151, %v172
      %v174 = vsub.f32 %v152, %v172
      %v175 = vmul.f32 %v173, 1.442695
      %v176 = vpow.pop %v175
      %v177 = vmul.f32 %v174, 1.442695
      %v178 = vpow.pop %v177
      %v179 = vadd.f32 %v176, %v178
      %180 = vadd.xlane.f32.xlu0 %v179
      %v181 = vpop.xlane.xlu0 %180
      %v182 = vrot.slane %v181, 4
      %v183 = vadd.f32 %v181, %v182
      %v184 = vrot.slane %v183, 2
      %v185 = vadd.f32 %v183, %v184
      %v186 = vrot.slane %v185, 1
      %v187 = vadd.f32 %v185, %v186
      %s188 = vtos %v187
      %s189 = sadd.f32 %s171, %s188
      %s190 = scalar_lea.smem [#allocation3], 0
      %191 = sst [smem:[%s190]] %s189
      %s192 = scalar_lea.smem [#allocation2], 0
      %193 = sst [smem:[%s192]] %s164
    $region29: #{tpu_custom_call.1} parent=1 // pred_fallthru
      _
    %s194 = sld [smem:[#allocation8]]
    %p195 = scmp.gt.s32.totalorder %s59, %s194
    %p196 = scmp.le.s32.totalorder %s59, %s194
    %p197 = pnand %p57, %p196
    %p198 = pneg %p197
    // Predicated region
    $region30: #{tpu_custom_call.1} parent=1 // pred_check
      _
    $region31: #{tpu_custom_call.1} parent=1 // pred_check_branch
      %200 = sbr.rel (%p197) target = $region33
    $region32: #{tpu_custom_call.1} parent=1 // pred_region
      %v201 = vld [vmem:[#allocation12] sm:$0xff]
      %v202 = vld [vmem:[#allocation12 + $0x8] sm:$0xff]
      %v203 = vadd.f32 %v201, 2.0
      %v204 = vadd.f32 %v202, 2.0
      %v205 = vmax.f32 %v203, 0.0
      %v206 = vmax.f32 %v204, 0.0
      %v207 = vmul.f32 %v205, %v201
      %v208 = vmul.f32 %v206, %v202
      %v209 = vmul.f32 %v207, 64.0
      %v210 = vmul.f32 %v208, 64.0
      %v211 = vmax.f32 %v209, %v210
      %212 = vmax.xlane.f32.xlu0 %v211
      %v213 = vpop.xlane.xlu0 %212
      %v214 = vrot.slane %v213, 4
      %v215 = vmax.f32 %v213, %v214
      %v216 = vrot.slane %v215, 2
      %v217 = vmax.f32 %v215, %v216
      %v218 = vrot.slane %v217, 1
      %v219 = vmax.f32 %v217, %v218
      %s220 = vtos %v219
      %s221 = sld [smem:[#allocation4]]
      %s222 = smax.f32 %s221, %s220
      %s223 = sld [smem:[#allocation5]]
      %s224 = ssub.f32 %s221, %s222
      %v225 = vstv %s224
      %v226 = vmul.f32 %v225, 1.442695
      %v227 = vpow.pop %v226
      %s228 = vtos %v227
      %s229 = smul.f32 %s223, %s228
      %v230 = vstv %s222
      %v231 = vsub.f32 %v209, %v230
      %v232 = vsub.f32 %v210, %v230
      %v233 = vmul.f32 %v231, 1.442695
      %v234 = vpow.pop %v233
      %v235 = vmul.f32 %v232, 1.442695
      %v236 = vpow.pop %v235
      %v237 = vadd.f32 %v234, %v236
      %238 = vadd.xlane.f32.xlu0 %v237
      %v239 = vpop.xlane.xlu0 %238
      %v240 = vrot.slane %v239, 4
      %v241 = vadd.f32 %v239, %v240
      %v242 = vrot.slane %v241, 2
      %v243 = vadd.f32 %v241, %v242
      %v244 = vrot.slane %v243, 1
      %v245 = vadd.f32 %v243, %v244
      %s246 = vtos %v245
      %s247 = sadd.f32 %s229, %s246
      %s248 = scalar_lea.smem [#allocation5], 0
      %249 = sst [smem:[%s248]] %s247
      %s250 = scalar_lea.smem [#allocation4], 0
      %251 = sst [smem:[%s250]] %s222
    $region33: #{tpu_custom_call.1} parent=1 // pred_fallthru
      _
    %p252 = pnand %p57, %p195
    %p253 = pneg %p252
    // Predicated region
    $region34: #{tpu_custom_call.1} parent=1 // pred_check
      _
    $region35: #{tpu_custom_call.1} parent=1 // pred_check_branch
      %255 = sbr.rel (%p252) target = $region37
    $region36: #{tpu_custom_call.1} parent=1 // pred_region
      %v256 = vld [vmem:[#allocation12] sm:$0xff]
      %v257 = vld [vmem:[#allocation12 + $0x8] sm:$0xff]
      %v258 = vadd.f32 %v256, 2.0
      %v259 = vadd.f32 %v257, 2.0
      %v260 = vmax.f32 %v258, 0.0
      %v261 = vmax.f32 %v259, 0.0
      %v262 = vmul.f32 %v260, %v256
      %v263 = vmul.f32 %v261, %v257
      %v264 = vmul.f32 %v262, 64.0
      %v265 = vmul.f32 %v263, 64.0
      %v266 = vlaneseq
      %v267 = vshrl.u32 %v266, 7
      %v268 = vadd.s32 %v267, 8
      %v269 = vlaneseq
      %v270 = vand.u32 %v269, 127
      %s271 = smul.u32 0, 2048
      %v272 = vmul.u32 %v267, 128
      %v273 = vmul.u32 %v268, 128
      %v274 = vstv %s271
      %v275 = vadd.s32 %v274, %v272
      %v276 = vadd.s32 %v274, %v273
      %v277 = vadd.s32 %v275, %v270
      %v278 = vadd.s32 %v276, %v270
      %v279 = vstv %s194
      %vm280 = vcmp.lt.s32.totalorder %v277, %v279
      %vm281 = vcmp.lt.s32.totalorder %v278, %v279
      %v282 = vsel %vm280, %v264, -1e+30
      %v283 = vsel %vm281, %v265, -1e+30
      %v284 = vmax.f32 %v282, %v283
      %285 = vmax.xlane.f32.xlu0 %v284
      %v286 = vpop.xlane.xlu0 %285
      %v287 = vrot.slane %v286, 4
      %v288 = vmax.f32 %v286, %v287
      %v289 = vrot.slane %v288, 2
      %v290 = vmax.f32 %v288, %v289
      %v291 = vrot.slane %v290, 1
      %v292 = vmax.f32 %v290, %v291
      %s293 = vtos %v292
      %s294 = sld [smem:[#allocation4]]
      %s295 = smax.f32 %s294, %s293
      %s296 = sld [smem:[#allocation5]]
      %s297 = ssub.f32 %s294, %s295
      %v298 = vstv %s297
      %v299 = vmul.f32 %v298, 1.442695
      %v300 = vpow.pop %v299
      %s301 = vtos %v300
      %s302 = smul.f32 %s296, %s301
      %v303 = vstv %s295
      %v304 = vsub.f32 %v282, %v303
      %v305 = vsub.f32 %v283, %v303
      %v306 = vmul.f32 %v304, 1.442695
      %v307 = vpow.pop %v306
      %v308 = vmul.f32 %v305, 1.442695
      %v309 = vpow.pop %v308
      %v310 = vadd.f32 %v307, %v309
      %311 = vadd.xlane.f32.xlu0 %v310
      %v312 = vpop.xlane.xlu0 %311
      %v313 = vrot.slane %v312, 4
      %v314 = vadd.f32 %v312, %v313
      %v315 = vrot.slane %v314, 2
      %v316 = vadd.f32 %v314, %v315
      %v317 = vrot.slane %v316, 1
      %v318 = vadd.f32 %v316, %v317
      %s319 = vtos %v318
      %s320 = sadd.f32 %s302, %s319
      %s321 = scalar_lea.smem [#allocation5], 0
      %322 = sst [smem:[%s321]] %s320
      %s323 = scalar_lea.smem [#allocation4], 0
      %324 = sst [smem:[%s323]] %s295
    $region37: #{tpu_custom_call.1} parent=1 // pred_fallthru
      _
    // Predicated region
    $region38: #{tpu_custom_call.1} parent=1 // pred_check
      %p325 = pneg %p44
    $region39: #{tpu_custom_call.1} parent=1 // pred_check_branch
      %327 = sbr.rel (%p325) target = $region41
    $region40: #{tpu_custom_call.1} parent=1 // pred_region
      %s328 = sld [smem:[#allocation2]]
      %s329 = sld [smem:[#allocation3]]
      %v330 = vstv %s329
      %v331 = vlog2.pop %v330
      %v332 = vmul.f32 %v331, 0.6931472
      %s333 = vtos %v332
      %s334 = sadd.f32 %s328, %s333
      %s335 = sld [smem:[#allocation4]]
      %s336 = sld [smem:[#allocation5]]
      %v337 = vstv %s336
      %v338 = vlog2.pop %v337
      %v339 = vmul.f32 %v338, 0.6931472
      %s340 = vtos %v339
      %s341 = sadd.f32 %s335, %s340
      %s342 = sadd.f32 %s341, %s334
      %s343 = scalar_lea.smem [#allocation14], 0
      %344 = sst [smem:[%s343]] %s342
    $region41: #{tpu_custom_call.1} parent=1 // pred_fallthru
      _
    // Predicated region
    $region42: #{tpu_custom_call.1} parent=1 // pred_check
      _
    $region43: #{tpu_custom_call.1} parent=1 // pred_check_branch
      %346 = sbr.rel (0) target = $region45
    $region44: #{tpu_custom_call.1} parent=1 // pred_region
      %s348 = ssub.s32 16, 16
      %349 = vsyncadd [#allocation11], %s348
      %352 = dma.smem_to_hbm [#allocation14], 16, %s4, [#allocation11]
    $region45: #{tpu_custom_call.1} parent=1 // pred_fallthru
      _
    // Predicated region
    $region46: #{tpu_custom_call.1} parent=1 // pred_check
      _
    $region47: #{tpu_custom_call.1} parent=1 // pred_check_branch
      %354 = sbr.rel (0) target = $region49
    $region48: #{tpu_custom_call.1} parent=1 // pred_region
      %355 = dma.done [#allocation11], 16
    $region49: #{tpu_custom_call.1} parent=1 // pred_fallthru
      _
    %356 = sfence
    %357 = vsyncpa [#allocation10], 1
    %358 = vsyncpa [#allocation13], 1
    %359 = vsyncpa [#allocation11], 1

</llo_original>
